<compile_context>
chip_gen: v7x
topology: tpu7x:2x2x1
jax: 0.10.0
libtpu: 0.0.40
codegen_flags: <defaults>
</compile_context>

<pallas_src>
import functools
import numpy as np
import jax
import jax.numpy as jnp
from jax import lax
from jax.experimental import pallas as pl
from jax.experimental.pallas import tpu as pltpu


def ortho_weight(ndim, rng):
    """Same semantics as the reference: U factor of the SVD of a Gaussian matrix."""
    W = rng.randn(ndim, ndim)
    u, s, v = np.linalg.svd(W)
    return u.astype("float32")


# --------------------- phase 1: hoisted x-side projection ---------------------
def _proj_kernel(x_ref, w_ref, b_ref, o_ref):
    o_ref[...] = (
        jnp.dot(x_ref[...].astype(w_ref.dtype), w_ref[...],
                preferred_element_type=jnp.float32)
        + b_ref[...].astype(jnp.float32)
    ).astype(o_ref.dtype)


def project_inputs(xs, wx, b, *, row_tile=128):
    """gx[t] = xs[t] @ Wx + b, computed as ONE big (T*B, in_dim) matmul."""
    T, B, in_dim = xs.shape
    four_m = wx.shape[1]
    rows = T * B
    x2 = xs.reshape(rows, in_dim)
    rt = row_tile if rows % row_tile == 0 else rows  # full-block fallback
    gx = pl.pallas_call(
        _proj_kernel,
        grid=(rows // rt,),
        in_specs=[
            pl.BlockSpec((rt, in_dim), lambda r: (r, 0)),        # x rows streamed
            pl.BlockSpec((in_dim, four_m), lambda r: (0, 0)),    # Wx resident
            pl.BlockSpec((1, four_m), lambda r: (0, 0)),         # bias resident
        ],
        out_specs=pl.BlockSpec((rt, four_m), lambda r: (r, 0)),
        out_shape=jax.ShapeDtypeStruct((rows, four_m), jnp.float32),
        compiler_params=pltpu.CompilerParams(
            dimension_semantics=("parallel",)),
    )(x2, wx, b)
    return gx.reshape(T, B, four_m)


# --------------------------- phase 2: recurrence -------------------------------
def _lstm_recurrent_kernel(gx_ref, h0_ref, c0_ref, wh_ref,
                           hseq_ref, c_fin_ref, h_fin_ref,
                           *, mem_dim, seq_len):
    """Whole sequence in one kernel body; h/c carried as fori_loop values."""
    M = mem_dim  # multiple of 128 -> every gate slice / store is lane-aligned

    def step(t, carry):
        h, c = carry
        # Recurrent half only: x-side (and bias) already folded into gx.
        gates = gx_ref[t] + jnp.dot(h.astype(wh_ref.dtype), wh_ref[...],
                                    preferred_element_type=jnp.float32)
        u = jnp.tanh(gates[:, 0:M])                   # candidate (cx + ch)
        ifo = jax.nn.sigmoid(gates[:, M:4 * M])       # i, f, o in one EUP stream
        i = ifo[:, 0:M]
        f = ifo[:, M:2 * M]
        o = ifo[:, 2 * M:3 * M]
        c_new = i * u + f * c
        h_new = o * jnp.tanh(c_new)
        hseq_ref[t] = h_new.astype(hseq_ref.dtype)    # per-step h, VMEM-resident slab
        return (h_new, c_new)

    h0 = h0_ref[...].astype(jnp.float32)
    c0 = c0_ref[...].astype(jnp.float32)
    h_fin, c_fin = lax.fori_loop(0, seq_len, step, (h0, c0))
    c_fin_ref[...] = c_fin.astype(c_fin_ref.dtype)
    h_fin_ref[...] = h_fin.astype(h_fin_ref.dtype)


def lstm_sequence_forward(xs, h0, c0, wx, wh, b, *, batch_tile=None):
    """Runs T LSTM_Cell steps; returns (h_seq, c_final, h_final), h_seq is (T, B, M)."""
    T, B, in_dim = xs.shape
    M = h0.shape[1]
    assert M % 128 == 0, "mem_dim must be a multiple of 128 (lane alignment)"

    # Phase 1: one MXU-efficient projection over all T*B rows.
    gx = project_inputs(xs, wx, b)                     # (T, B, 4M), f32

    # Batch tiling: with larger B, pick bt = B // 2 so v7x's two TensorCores
    # each run an independent shard of the recurrence.  Demo shapes use bt = B.
    bt = B if batch_tile is None else batch_tile
    assert B % bt == 0 and (bt % 8 == 0 or bt == B)

    # Explicit, conservative scoped-VMEM budget (fits v7x's 64 MiB as well).
    # TODO(synk): for long sequences where gx (T*bt*4M f32) no longer fits VMEM,
    # switch gx to memory_space=pl.ANY and manually double-buffer time chunks
    # with pltpu.make_async_copy.
    resident = (T * bt * 4 * M * 4            # gx block
                + T * bt * M * 4              # h_seq block
                + 2 * bt * M * 4              # h0, c0
                + M * 4 * M * wh.dtype.itemsize)   # Wh
    vmem_limit = int(min(max(3 * resident, 32 * 1024 * 1024), 48 * 1024 * 1024))

    kernel = functools.partial(_lstm_recurrent_kernel, mem_dim=M, seq_len=T)
    h_seq, c_fin, h_fin = pl.pallas_call(
        kernel,
        grid=(B // bt,),
        in_specs=[
            pl.BlockSpec((T, bt, 4 * M), lambda bi: (0, bi, 0)),   # gx resident
            pl.BlockSpec((bt, M), lambda bi: (bi, 0)),             # h0
            pl.BlockSpec((bt, M), lambda bi: (bi, 0)),             # c0
            pl.BlockSpec((M, 4 * M), lambda bi: (0, 0)),           # Wh resident
        ],
        out_specs=(
            pl.BlockSpec((T, bt, M), lambda bi: (0, bi, 0)),       # per-step h
            pl.BlockSpec((bt, M), lambda bi: (bi, 0)),             # final c
            pl.BlockSpec((bt, M), lambda bi: (bi, 0)),             # final h
        ),
        out_shape=(
            jax.ShapeDtypeStruct((T, B, M), jnp.float32),
            jax.ShapeDtypeStruct((B, M), jnp.float32),
            jax.ShapeDtypeStruct((B, M), jnp.float32),
        ),
        compiler_params=pltpu.CompilerParams(
            dimension_semantics=("parallel",),       # batch tiles -> megacore
            vmem_limit_bytes=vmem_limit),
    )(gx, h0, c0, wh)
    return h_seq, c_fin, h_fin


def lstm_cell_forward(x, h, c, wx, wh, b):
    """Single-step API matching LSTM_Cell.forward(input, h, c) -> (c, h)."""
    _, c_fin, h_fin = lstm_sequence_forward(x[None], h, c, wx, wh, b)
    return c_fin, h_fin


# ------------------------------ parameters ------------------------------------
def build_params(in_dim, mem_dim, weight_dtype=jnp.float32, seed=0):
    """Deterministic parameter construction mirroring LSTM_Cell.__init__.

    nn.Linear computes y = x @ W.T + b, so we store W.T; the four gates are
    concatenated along the output axis in order [c, i, f, o].
    """
    assert in_dim == mem_dim, "reference module requires in_dim == mem_dim"
    rng = np.random.RandomState(seed)

    # h-side gates (no bias): ih, fh, oh, ch
    W_ih = ortho_weight(mem_dim, rng)
    W_fh = ortho_weight(mem_dim, rng)
    W_oh = ortho_weight(mem_dim, rng)
    W_ch = ortho_weight(mem_dim, rng)
    # x-side gates (with bias): cx, ox, fx, ix
    W_cx = ortho_weight(mem_dim, rng)
    W_ox = ortho_weight(mem_dim, rng)
    W_fx = ortho_weight(mem_dim, rng)
    W_ix = ortho_weight(mem_dim, rng)

    bound = 1.0 / np.sqrt(in_dim)   # nn.Linear default bias init
    b_cx = rng.uniform(-bound, bound, size=(mem_dim,)).astype("float32")
    b_ox = rng.uniform(-bound, bound, size=(mem_dim,)).astype("float32")
    b_fx = rng.uniform(-bound, bound, size=(mem_dim,)).astype("float32")
    b_ix = rng.uniform(-bound, bound, size=(mem_dim,)).astype("float32")

    # Gate column order [c, i, f, o].
    Wx = np.concatenate([W_cx.T, W_ix.T, W_fx.T, W_ox.T], axis=1)   # (in_dim, 4M)
    Wh = np.concatenate([W_ch.T, W_ih.T, W_fh.T, W_oh.T], axis=1)   # (mem_dim, 4M)
    b = np.concatenate([b_cx, b_ix, b_fx, b_ox])[None, :]           # (1, 4M)

    return (jnp.asarray(Wx, dtype=weight_dtype),
            jnp.asarray(Wh, dtype=weight_dtype),
            jnp.asarray(b, dtype=jnp.float32))


# ------------------------------ references ------------------------------------
def reference_step(x, h, c, wx, wh, b, mem_dim):
    """Pure-JAX single step matching the PyTorch forward exactly (f32)."""
    gates = (x.astype(jnp.float32) @ wx.astype(jnp.float32)
             + h.astype(jnp.float32) @ wh.astype(jnp.float32)
             + b.astype(jnp.float32))
    M = mem_dim
    u = jnp.tanh(gates[:, 0 * M:1 * M])
    i = jax.nn.sigmoid(gates[:, 1 * M:2 * M])
    f = jax.nn.sigmoid(gates[:, 2 * M:3 * M])
    o = jax.nn.sigmoid(gates[:, 3 * M:4 * M])
    c_new = i * u + f * c
    h_new = o * jnp.tanh(c_new)
    return c_new, h_new


def reference_sequence_bf16(xs, h0, c0, wx_bf, wh_bf, b, mem_dim):
    """Reference that mirrors the kernel's bf16 rounding (operands bf16, f32 accum)."""
    T, B, in_dim = xs.shape
    M = mem_dim
    gx = (jnp.dot(xs.reshape(T * B, in_dim).astype(jnp.bfloat16), wx_bf,
                  preferred_element_type=jnp.float32)
          + b).reshape(T, B, 4 * M)
    h, c = h0, c0
    outs = []
    for t in range(T):
        gates = gx[t] + jnp.dot(h.astype(jnp.bfloat16), wh_bf,
                                preferred_element_type=jnp.float32)
        u = jnp.tanh(gates[:, 0 * M:1 * M])
        i = jax.nn.sigmoid(gates[:, 1 * M:2 * M])
        f = jax.nn.sigmoid(gates[:, 2 * M:3 * M])
        o = jax.nn.sigmoid(gates[:, 3 * M:4 * M])
        c = i * u + f * c
        h = o * jnp.tanh(c)
        outs.append(h)
    return jnp.stack(outs, 0), c, h


# ---------------------------------- demo ---------------------------------------
if __name__ == "__main__":
    T, B = 16, 8
    in_dim = mem_dim = 128   # lane-aligned (multiple of 128)

    key = jax.random.PRNGKey(0)
    kx, kh, kc = jax.random.split(key, 3)
    xs = jax.random.normal(kx, (T, B, in_dim), dtype=jnp.float32)
    h0 = jax.random.normal(kh, (B, mem_dim), dtype=jnp.float32)
    c0 = jax.random.normal(kc, (B, mem_dim), dtype=jnp.float32)

    Wx, Wh, b = build_params(in_dim, mem_dim)

    # ---- fused sequence kernels (f32 weights) ----
    h_seq, c_fin, h_fin = lstm_sequence_forward(xs, h0, c0, Wx, Wh, b)
    jax.block_until_ready((h_seq, c_fin, h_fin))

    # ---- pure-JAX reference (PyTorch step applied T times) ----
    h_ref, c_ref = h0, c0
    h_seq_ref = []
    for t in range(T):
        c_ref, h_ref = reference_step(xs[t], h_ref, c_ref, Wx, Wh, b, mem_dim)
        h_seq_ref.append(h_ref)
    h_seq_ref = jnp.stack(h_seq_ref, axis=0)

    np.testing.assert_allclose(np.asarray(h_seq), np.asarray(h_seq_ref),
                               rtol=2e-3, atol=2e-3)
    np.testing.assert_allclose(np.asarray(c_fin), np.asarray(c_ref),
                               rtol=2e-3, atol=2e-3)
    np.testing.assert_allclose(np.asarray(h_fin), np.asarray(h_ref),
                               rtol=2e-3, atol=2e-3)

    # ---- single-step API (matches LSTM_Cell.forward semantics) ----
    c1, h1 = lstm_cell_forward(xs[0], h0, c0, Wx, Wh, b)
    jax.block_until_ready((c1, h1))
    c1_ref, h1_ref = reference_step(xs[0], h0, c0, Wx, Wh, b, mem_dim)
    np.testing.assert_allclose(np.asarray(c1), np.asarray(c1_ref),
                               rtol=2e-3, atol=2e-3)
    np.testing.assert_allclose(np.asarray(h1), np.asarray(h1_ref),
                               rtol=2e-3, atol=2e-3)

    # ---- bf16-weight path, validated against a bf16-rounding-matched reference ----
    Wx_bf = Wx.astype(jnp.bfloat16)
    Wh_bf = Wh.astype(jnp.bfloat16)
    h_seq_bf, c_bf, h_bf = lstm_sequence_forward(xs, h0, c0, Wx_bf, Wh_bf, b)
    jax.block_until_ready((h_seq_bf, c_bf, h_bf))
    h_seq_bref, c_bref, h_bref = reference_sequence_bf16(
        xs, h0, c0, Wx_bf, Wh_bf, b, mem_dim)
    np.testing.assert_allclose(np.asarray(h_seq_bf), np.asarray(h_seq_bref),
                               rtol=5e-3, atol=5e-3)
    np.testing.assert_allclose(np.asarray(c_bf), np.asarray(c_bref),
                               rtol=5e-3, atol=5e-3)

    print("KERNEL_OK")
</pallas_src>

<mosaic_0001>
module attributes {stable_mosaic.version = 11 : i64} {
  func.func @_proj_kernel(%arg0: i32, %arg1: memref<128x128xf32, #tpu.memory_space<vmem>>, %arg2: memref<128x512xf32, #tpu.memory_space<vmem>>, %arg3: memref<1x512xf32, #tpu.memory_space<vmem>>, %arg4: memref<128x512xf32, #tpu.memory_space<vmem>>) attributes {dimension_semantics = [#tpu.dimension_semantics<parallel>], iteration_bounds = array<i64: 1>, scalar_prefetch = 0 : i64, scratch_operands = 0 : i64, tpu.core_type = #tpu.core_type<tc>, window_params = [{transform_indices = @transform_0, window_bounds = array<i64: 128, 128>}, {pipeline_mode = #tpu.pipeline_mode<synchronous>, transform_indices = @transform_1, window_bounds = array<i64: 128, 512>}, {pipeline_mode = #tpu.pipeline_mode<synchronous>, transform_indices = @transform_2, window_bounds = array<i64: 1, 512>}, {transform_indices = @transform_3, window_bounds = array<i64: 128, 512>}]} {
    %c0 = arith.constant 0 : index
    %c0_0 = arith.constant 0 : index
    %0 = vector.load %arg1[%c0, %c0_0] : memref<128x128xf32, #tpu.memory_space<vmem>>, vector<128x128xf32>
    %c0_1 = arith.constant 0 : index
    %c0_2 = arith.constant 0 : index
    %1 = vector.load %arg2[%c0_1, %c0_2] : memref<128x512xf32, #tpu.memory_space<vmem>>, vector<128x512xf32>
    %cst = arith.constant dense<0.000000e+00> : vector<128x512xf32>
    %2 = tpu.matmul %0, %1, %cst {dimension_numbers = #tpu.dot_dimension_numbers<[1], [0], [0], [1], [0, 0, 1, 1], [], []>} : vector<128x128xf32>, vector<128x512xf32>, vector<128x512xf32> -> vector<128x512xf32>
    %c0_3 = arith.constant 0 : index
    %c0_4 = arith.constant 0 : index
    %3 = vector.load %arg3[%c0_3, %c0_4] : memref<1x512xf32, #tpu.memory_space<vmem>>, vector<1x512xf32>
    %4 = vector.broadcast %3 : vector<1x512xf32> to vector<128x512xf32>
    %5 = arith.addf %2, %4 : vector<128x512xf32>
    %c0_5 = arith.constant 0 : index
    %c0_6 = arith.constant 0 : index
    %6 = vector.load %arg4[%c0_5, %c0_6] : memref<128x512xf32, #tpu.memory_space<vmem>>, vector<128x512xf32>
    tpu.vector_store %arg4[%c0_5, %c0_6], %5 {strides = array<i32>} : memref<128x512xf32, #tpu.memory_space<vmem>>, vector<128x512xf32>,
    return
  }
  func.func @transform_0(%arg0: i32) -> (i32, i32) {
    %c0_i32 = arith.constant 0 : i32
    %c0_i32_0 = arith.constant 0 : i32
    return %arg0, %c0_i32 : i32, i32
  }
  func.func @transform_1(%arg0: i32) -> (i32, i32) {
    %c0_i32 = arith.constant 0 : i32
    %c0_i32_0 = arith.constant 0 : i32
    %c0_i32_1 = arith.constant 0 : i32
    return %c0_i32, %c0_i32_0 : i32, i32
  }
  func.func @transform_2(%arg0: i32) -> (i32, i32) {
    %c0_i32 = arith.constant 0 : i32
    %c0_i32_0 = arith.constant 0 : i32
    %c0_i32_1 = arith.constant 0 : i32
    return %c0_i32, %c0_i32_0 : i32, i32
  }
  func.func @transform_3(%arg0: i32) -> (i32, i32) {
    %c0_i32 = arith.constant 0 : i32
    %c0_i32_0 = arith.constant 0 : i32
    return %arg0, %c0_i32 : i32, i32
  }
}

</mosaic_0001>

<llo_original>
// kernel: tpu_custom_call.1
$region0: #{tpu_custom_call.1}
  #allocation0 [shape = 'u32[]', space=smem, size = 0x4, offset = 0x4, fixed_abs, tag = 'smem constant byte address 0x4 - core index']
  #allocation1 [shape = 'u32[144,128]{1,0:T(1,128)}', space=vmem, size = 0x12000, scoped, tag = 'internal scratch']
  %s0 = inlined_call_operand.hbm [shape: f32[128,128], index: 0, kind: input, shape index: {}]
  %s1 = inlined_call_operand.hbm [shape: f32[128,512], index: 1, kind: input, shape index: {}]
  %s2 = inlined_call_operand.vmem [shape: f32[1,512], index: 2, kind: input, shape index: {}]
  %s3 = inlined_call_operand.hbm [shape: f32[128,512], index: 3, kind: output, shape index: {}]
  %s4 = sld [smem:[#allocation0]]
  $region30: #{tpu_custom_call.1} parent=0
    _
  %s6 = ssub.s32 1, %s4
  %s7 = scalar_select 0, %s6, %s4
  $region1: #{tpu_custom_call.1} parent=0
    #allocation2 [shape = 'u8[65536]{0}', space=vmem, size = 0x10000, scoped, tag = 'input window, operand 0, single buffered']
    #allocation3 [shape = 's32[1]{0}', space=sflag, size = 0x4, scoped, tag = 'scoped memory for tpu_custom_call.1']
    #allocation4 [shape = 's32[1]{0}', space=sflag, size = 0x4, scoped, tag = 'scoped memory for tpu_custom_call.1']
    #allocation5 [shape = 'u8[262144]{0}', space=vmem, size = 0x40000, scoped, tag = 'input window, operand 1, single buffered']
    #allocation6 [shape = 's32[1]{0}', space=sflag, size = 0x4, scoped, tag = 'scoped memory for tpu_custom_call.1']
    #allocation7 [shape = 'u8[262144]{0}', space=vmem, size = 0x40000, scoped, tag = 'output window, operand 0, single buffered']
    %8 = vsyncpa [#allocation3], 0
    %9 = vsyncpa [#allocation6], 0
    %10 = vsyncpa [#allocation4], 0
    // Predicated region
    $region2: #{tpu_custom_call.1} parent=1 // pred_check
      _
    $region3: #{tpu_custom_call.1} parent=1 // pred_check_branch
      %12 = sbr.rel (0) target = $region5
    $region4: #{tpu_custom_call.1} parent=1 // pred_region
      %s14 = ssub.s32 2048, 2048
      %15 = vsyncadd [#allocation3], %s14
      %s16 = sshll.u32 [#allocation2], 4
      %s17 = int_to_ptr.vmem [resolvable:$true] %s16
      %22 = dma.hbm_to_vmem [thread:$0]  %s0, 2048, %s17, [#allocation3], 128, 128, 8
    $region5: #{tpu_custom_call.1} parent=1 // pred_fallthru
      _
    // Predicated region
    $region6: #{tpu_custom_call.1} parent=1 // pred_check
      _
    $region7: #{tpu_custom_call.1} parent=1 // pred_check_branch
      %24 = sbr.rel (0) target = $region9
    $region8: #{tpu_custom_call.1} parent=1 // pred_region
      %s26 = ssub.s32 8192, 8192
      %27 = vsyncadd [#allocation6], %s26
      %s28 = sshll.u32 [#allocation5], 4
      %s29 = int_to_ptr.vmem [resolvable:$true] %s28
      %34 = dma.hbm_to_vmem [thread:$0]  %s1, 8192, %s29, [#allocation6], 512, 512, 32
    $region9: #{tpu_custom_call.1} parent=1 // pred_fallthru
      _
    // Predicated region
    $region10: #{tpu_custom_call.1} parent=1 // pred_check
      _
    $region11: #{tpu_custom_call.1} parent=1 // pred_check_branch
      %36 = sbr.rel (0) target = $region13
    $region12: #{tpu_custom_call.1} parent=1 // pred_region
      _
    $region13: #{tpu_custom_call.1} parent=1 // pred_fallthru
      _
    // Predicated region
    $region14: #{tpu_custom_call.1} parent=1 // pred_check
      _
    $region15: #{tpu_custom_call.1} parent=1 // pred_check_branch
      %38 = sbr.rel (0) target = $region17
    $region16: #{tpu_custom_call.1} parent=1 // pred_region
      %39 = dma.done [#allocation3], 2048
    $region17: #{tpu_custom_call.1} parent=1 // pred_fallthru
      _
    // Predicated region
    $region18: #{tpu_custom_call.1} parent=1 // pred_check
      _
    $region19: #{tpu_custom_call.1} parent=1 // pred_check_branch
      %41 = sbr.rel (0) target = $region21
    $region20: #{tpu_custom_call.1} parent=1 // pred_region
      %42 = dma.done [#allocation6], 8192
    $region21: #{tpu_custom_call.1} parent=1 // pred_fallthru
      _
    %v43 = vld [vmem:[#allocation2] sm:$0xff]
    %v44 = vld [vmem:[#allocation2 + $0x8] sm:$0xff]
    %v45 = vld [vmem:[#allocation2 + $0x10] sm:$0xff]
    %v46 = vld [vmem:[#allocation2 + $0x18] sm:$0xff]
    %v47 = vld [vmem:[#allocation2 + $0x20] sm:$0xff]
    %v48 = vld [vmem:[#allocation2 + $0x28] sm:$0xff]
    %v49 = vld [vmem:[#allocation2 + $0x30] sm:$0xff]
    %v50 = vld [vmem:[#allocation2 + $0x38] sm:$0xff]
    %v51 = vld [vmem:[#allocation2 + $0x40] sm:$0xff]
    %v52 = vld [vmem:[#allocation2 + $0x48] sm:$0xff]
    %v53 = vld [vmem:[#allocation2 + $0x50] sm:$0xff]
    %v54 = vld [vmem:[#allocation2 + $0x58] sm:$0xff]
    %v55 = vld [vmem:[#allocation2 + $0x60] sm:$0xff]
    %v56 = vld [vmem:[#allocation2 + $0x68] sm:$0xff]
    %v57 = vld [vmem:[#allocation2 + $0x70] sm:$0xff]
    %v58 = vld [vmem:[#allocation2 + $0x78] sm:$0xff]
    %v59 = vld [vmem:[#allocation5] sm:$0xff]
    %v60 = vld [vmem:[#allocation5 + $0x8] sm:$0xff]
    %v61 = vld [vmem:[#allocation5 + $0x10] sm:$0xff]
    %v62 = vld [vmem:[#allocation5 + $0x18] sm:$0xff]
    %v63 = vld [vmem:[#allocation5 + $0x20] sm:$0xff]
    %v64 = vld [vmem:[#allocation5 + $0x28] sm:$0xff]
    %v65 = vld [vmem:[#allocation5 + $0x30] sm:$0xff]
    %v66 = vld [vmem:[#allocation5 + $0x38] sm:$0xff]
    %v67 = vld [vmem:[#allocation5 + $0x40] sm:$0xff]
    %v68 = vld [vmem:[#allocation5 + $0x48] sm:$0xff]
    %v69 = vld [vmem:[#allocation5 + $0x50] sm:$0xff]
    %v70 = vld [vmem:[#allocation5 + $0x58] sm:$0xff]
    %v71 = vld [vmem:[#allocation5 + $0x60] sm:$0xff]
    %v72 = vld [vmem:[#allocation5 + $0x68] sm:$0xff]
    %v73 = vld [vmem:[#allocation5 + $0x70] sm:$0xff]
    %v74 = vld [vmem:[#allocation5 + $0x78] sm:$0xff]
    %v75 = vld [vmem:[#allocation5 + $0x80] sm:$0xff]
    %v76 = vld [vmem:[#allocation5 + $0x88] sm:$0xff]
    %v77 = vld [vmem:[#allocation5 + $0x90] sm:$0xff]
    %v78 = vld [vmem:[#allocation5 + $0x98] sm:$0xff]
    %v79 = vld [vmem:[#allocation5 + $0xa0] sm:$0xff]
    %v80 = vld [vmem:[#allocation5 + $0xa8] sm:$0xff]
    %v81 = vld [vmem:[#allocation5 + $0xb0] sm:$0xff]
    %v82 = vld [vmem:[#allocation5 + $0xb8] sm:$0xff]
    %v83 = vld [vmem:[#allocation5 + $0xc0] sm:$0xff]
    %v84 = vld [vmem:[#allocation5 + $0xc8] sm:$0xff]
    %v85 = vld [vmem:[#allocation5 + $0xd0] sm:$0xff]
    %v86 = vld [vmem:[#allocation5 + $0xd8] sm:$0xff]
    %v87 = vld [vmem:[#allocation5 + $0xe0] sm:$0xff]
    %v88 = vld [vmem:[#allocation5 + $0xe8] sm:$0xff]
    %v89 = vld [vmem:[#allocation5 + $0xf0] sm:$0xff]
    %v90 = vld [vmem:[#allocation5 + $0xf8] sm:$0xff]
    %v91 = vld [vmem:[#allocation5 + $0x100] sm:$0xff]
    %v92 = vld [vmem:[#allocation5 + $0x108] sm:$0xff]
    %v93 = vld [vmem:[#allocation5 + $0x110] sm:$0xff]
    %v94 = vld [vmem:[#allocation5 + $0x118] sm:$0xff]
    %v95 = vld [vmem:[#allocation5 + $0x120] sm:$0xff]
    %v96 = vld [vmem:[#allocation5 + $0x128] sm:$0xff]
    %v97 = vld [vmem:[#allocation5 + $0x130] sm:$0xff]
    %v98 = vld [vmem:[#allocation5 + $0x138] sm:$0xff]
    %v99 = vld [vmem:[#allocation5 + $0x140] sm:$0xff]
    %v100 = vld [vmem:[#allocation5 + $0x148] sm:$0xff]
    %v101 = vld [vmem:[#allocation5 + $0x150] sm:$0xff]
    %v102 = vld [vmem:[#allocation5 + $0x158] sm:$0xff]
    %v103 = vld [vmem:[#allocation5 + $0x160] sm:$0xff]
    %v104 = vld [vmem:[#allocation5 + $0x168] sm:$0xff]
    %v105 = vld [vmem:[#allocation5 + $0x170] sm:$0xff]
    %v106 = vld [vmem:[#allocation5 + $0x178] sm:$0xff]
    %v107 = vld [vmem:[#allocation5 + $0x180] sm:$0xff]
    %v108 = vld [vmem:[#allocation5 + $0x188] sm:$0xff]
    %v109 = vld [vmem:[#allocation5 + $0x190] sm:$0xff]
    %v110 = vld [vmem:[#allocation5 + $0x198] sm:$0xff]
    %v111 = vld [vmem:[#allocation5 + $0x1a0] sm:$0xff]
    %v112 = vld [vmem:[#allocation5 + $0x1a8] sm:$0xff]
    %v113 = vld [vmem:[#allocation5 + $0x1b0] sm:$0xff]
    %v114 = vld [vmem:[#allocation5 + $0x1b8] sm:$0xff]
    %v115 = vld [vmem:[#allocation5 + $0x1c0] sm:$0xff]
    %v116 = vld [vmem:[#allocation5 + $0x1c8] sm:$0xff]
    %v117 = vld [vmem:[#allocation5 + $0x1d0] sm:$0xff]
    %v118 = vld [vmem:[#allocation5 + $0x1d8] sm:$0xff]
    %v119 = vld [vmem:[#allocation5 + $0x1e0] sm:$0xff]
    %v120 = vld [vmem:[#allocation5 + $0x1e8] sm:$0xff]
    %v121 = vld [vmem:[#allocation5 + $0x1f0] sm:$0xff]
    %v122 = vld [vmem:[#allocation5 + $0x1f8] sm:$0xff]
    %v123 = vld [vmem:[%s2] sm:$0xf]
    %v125 = vlaneseq
    %v126 = vshrl.u32 %v125, 7
    %v127 = vsub.s32 0, %v126
    %v128 = vrot.slane %v123, %v127
    %v129 = vlaneseq
    %v130 = vshrl.u32 %v129, 7
    %v131 = vsub.s32 1, %v130
    %v132 = vrot.slane %v123, %v131
    %v133 = vlaneseq
    %v134 = vshrl.u32 %v133, 7
    %v135 = vsub.s32 2, %v134
    %v136 = vrot.slane %v123, %v135
    %v137 = vlaneseq
    %v138 = vshrl.u32 %v137, 7
    %v139 = vsub.s32 3, %v138
    %v140 = vrot.slane %v123, %v139
    %145 = vmatprep.subr.mxu0 %v60
    %146 = vmatpush1.msra.mxu0 %v59
    %147 = vmatprep.subr.mxu0 %v64
    %148 = vmatpush1.msra.mxu0 %v63
    %149 = vmatprep.subr.mxu0 %v68
    %150 = vmatpush1.msra.mxu0 %v67
    %151 = vmatprep.subr.mxu0 %v72
    %152 = vmatpush1.msra.mxu0 %v71
    %153 = vmatprep.subr.mxu0 %v76
    %154 = vmatpush1.msra.mxu0 %v75
    %155 = vmatprep.subr.mxu0 %v80
    %156 = vmatpush1.msra.mxu0 %v79
    %157 = vmatprep.subr.mxu0 %v84
    %158 = vmatpush1.msra.mxu0 %v83
    %159 = vmatprep.subr.mxu0 %v88
    %160 = vmatpush1.msra.mxu0 %v87
    %161 = vmatprep.subr.mxu0 %v92
    %162 = vmatpush1.msra.mxu0 %v91
    %163 = vmatprep.subr.mxu0 %v96
    %164 = vmatpush1.msra.mxu0 %v95
    %165 = vmatprep.subr.mxu0 %v100
    %166 = vmatpush1.msra.mxu0 %v99
    %167 = vmatprep.subr.mxu0 %v104
    %168 = vmatpush1.msra.mxu0 %v103
    %169 = vmatprep.subr.mxu0 %v108
    %170 = vmatpush1.msra.mxu0 %v107
    %171 = vmatprep.subr.mxu0 %v112
    %172 = vmatpush1.msra.mxu0 %v111
    %173 = vmatprep.subr.mxu0 %v116
    %174 = vmatpush1.msra.mxu0 %v115
    %175 = vmatprep.subr.mxu0 %v120
    %176 = vmatpush1.msra.mxu0 %v119
    %177 = vmatprep.subr.mxu0 0.0
    %178 = vmatpush1.msra.mxu0 0.0
    %179 = vmatprep.subr.mxu0 0.0
    %180 = vmatpush1.msra.mxu0 0.0
    %181 = vmatprep.subr.mxu0 0.0
    %182 = vmatpush1.msra.mxu0 0.0
    %183 = vmatprep.subr.mxu0 0.0
    %184 = vmatpush1.msra.mxu0 0.0
    %185 = vmatprep.subr.mxu0 0.0
    %186 = vmatpush1.msra.mxu0 0.0
    %187 = vmatprep.subr.mxu0 0.0
    %188 = vmatpush1.msra.mxu0 0.0
    %189 = vmatprep.subr.mxu0 0.0
    %190 = vmatpush1.msra.mxu0 0.0
    %191 = vmatprep.subr.mxu0 0.0
    %192 = vmatpush1.msra.mxu0 0.0
    %193 = vmatprep.subr.mxu0 0.0
    %194 = vmatpush1.msra.mxu0 0.0
    %195 = vmatprep.subr.mxu0 0.0
    %196 = vmatpush1.msra.mxu0 0.0
    %197 = vmatprep.subr.mxu0 0.0
    %198 = vmatpush1.msra.mxu0 0.0
    %199 = vmatprep.subr.mxu0 0.0
    %200 = vmatpush1.msra.mxu0 0.0
    %201 = vmatprep.subr.mxu0 0.0
    %202 = vmatpush1.msra.mxu0 0.0
    %203 = vmatprep.subr.mxu0 0.0
    %204 = vmatpush1.msra.mxu0 0.0
    %205 = vmatprep.subr.mxu0 0.0
    %206 = vmatpush1.msra.mxu0 0.0
    %207 = vmatprep.subr.mxu0 0.0
    %208 = vmatpush1.msra.mxu0 0.0
    %209 = vmatprep.mubr.f32.mxu0 0.0
    %210 = vmatmul.mubr.f32.gmra.mrb[0].mxu0 %v43
    %v211 = vpop.f32.mrb[0].mxu0
    %v212 = vadd.f32 %v128, %v211
    %v213 = vpop.f32.mrb[0].mxu0
    %v214 = vadd.f32 %v132, %v213
    %215 = vmatprep.mubr.f32.mxu0 0.0
    %216 = vmatmul.mubr.f32.gmra.mrb[0].mxu0 %v44
    %v217 = vpop.f32.mrb[0].mxu0
    %v218 = vadd.f32 %v128, %v217
    %v219 = vpop.f32.mrb[0].mxu0
    %v220 = vadd.f32 %v132, %v219
    %221 = vmatprep.mubr.f32.mxu0 0.0
    %222 = vmatmul.mubr.f32.gmra.mrb[0].mxu0 %v45
    %v223 = vpop.f32.mrb[0].mxu0
    %v224 = vadd.f32 %v128, %v223
    %v225 = vpop.f32.mrb[0].mxu0
    %v226 = vadd.f32 %v132, %v225
    %227 = vmatprep.mubr.f32.mxu0 0.0
    %228 = vmatmul.mubr.f32.gmra.mrb[0].mxu0 %v46
    %v229 = vpop.f32.mrb[0].mxu0
    %v230 = vadd.f32 %v128, %v229
    %v231 = vpop.f32.mrb[0].mxu0
    %v232 = vadd.f32 %v132, %v231
    %233 = vmatprep.mubr.f32.mxu0 0.0
    %234 = vmatmul.mubr.f32.gmra.mrb[0].mxu0 %v47
    %v235 = vpop.f32.mrb[0].mxu0
    %v236 = vadd.f32 %v128, %v235
    %v237 = vpop.f32.mrb[0].mxu0
    %v238 = vadd.f32 %v132, %v237
    %239 = vmatprep.mubr.f32.mxu0 0.0
    %240 = vmatmul.mubr.f32.gmra.mrb[0].mxu0 %v48
    %v241 = vpop.f32.mrb[0].mxu0
    %v242 = vadd.f32 %v128, %v241
    %v243 = vpop.f32.mrb[0].mxu0
    %v244 = vadd.f32 %v132, %v243
    %245 = vmatprep.mubr.f32.mxu0 0.0
    %246 = vmatmul.mubr.f32.gmra.mrb[0].mxu0 %v49
    %v247 = vpop.f32.mrb[0].mxu0
    %v248 = vadd.f32 %v128, %v247
    %v249 = vpop.f32.mrb[0].mxu0
    %v250 = vadd.f32 %v132, %v249
    %251 = vmatprep.mubr.f32.mxu0 0.0
    %252 = vmatmul.mubr.f32.gmra.mrb[0].mxu0 %v50
    %v253 = vpop.f32.mrb[0].mxu0
    %v254 = vadd.f32 %v128, %v253
    %v255 = vpop.f32.mrb[0].mxu0
    %v256 = vadd.f32 %v132, %v255
    %257 = vmatprep.mubr.f32.mxu0 0.0
    %258 = vmatmul.mubr.f32.gmra.mrb[0].mxu0 %v51
    %v259 = vpop.f32.mrb[0].mxu0
    %v260 = vadd.f32 %v128, %v259
    %v261 = vpop.f32.mrb[0].mxu0
    %v262 = vadd.f32 %v132, %v261
    %263 = vmatprep.mubr.f32.mxu0 0.0
    %264 = vmatmul.mubr.f32.gmra.mrb[0].mxu0 %v52
    %v265 = vpop.f32.mrb[0].mxu0
    %v266 = vadd.f32 %v128, %v265
    %v267 = vpop.f32.mrb[0].mxu0
    %v268 = vadd.f32 %v132, %v267
    %269 = vmatprep.mubr.f32.mxu0 0.0
    %270 = vmatmul.mubr.f32.gmra.mrb[0].mxu0 %v53
    %v271 = vpop.f32.mrb[0].mxu0
    %v272 = vadd.f32 %v128, %v271
    %v273 = vpop.f32.mrb[0].mxu0
    %v274 = vadd.f32 %v132, %v273
    %275 = vmatprep.mubr.f32.mxu0 0.0
    %276 = vmatmul.mubr.f32.gmra.mrb[0].mxu0 %v54
    %v277 = vpop.f32.mrb[0].mxu0
    %v278 = vadd.f32 %v128, %v277
    %v279 = vpop.f32.mrb[0].mxu0
    %v280 = vadd.f32 %v132, %v279
    %281 = vmatprep.mubr.f32.mxu0 0.0
    %282 = vmatmul.mubr.f32.gmra.mrb[0].mxu0 %v55
    %v283 = vpop.f32.mrb[0].mxu0
    %v284 = vadd.f32 %v128, %v283
    %v285 = vpop.f32.mrb[0].mxu0
    %v286 = vadd.f32 %v132, %v285
    %287 = vmatprep.mubr.f32.mxu0 0.0
    %288 = vmatmul.mubr.f32.gmra.mrb[0].mxu0 %v56
    %v289 = vpop.f32.mrb[0].mxu0
    %v290 = vadd.f32 %v128, %v289
    %v291 = vpop.f32.mrb[0].mxu0
    %v292 = vadd.f32 %v132, %v291
    %293 = vmatprep.mubr.f32.mxu0 0.0
    %294 = vmatmul.mubr.f32.gmra.mrb[0].mxu0 %v57
    %v295 = vpop.f32.mrb[0].mxu0
    %v296 = vadd.f32 %v128, %v295
    %v297 = vpop.f32.mrb[0].mxu0
    %v298 = vadd.f32 %v132, %v297
    %299 = vmatprep.mubr.f32.mxu0 0.0
    %300 = vmatmul.mubr.f32.gmra.mrb[0].mxu0 %v58
    %v301 = vpop.f32.mrb[0].mxu0
    %v302 = vadd.f32 %v128, %v301
    %v303 = vpop.f32.mrb[0].mxu0
    %v304 = vadd.f32 %v132, %v303
    %305 = vdwg.mxu0
    %306 = vmatprep.subr.mxu0 %v62
    %307 = vmatpush1.msra.mxu0 %v61
    %308 = vmatprep.subr.mxu0 %v66
    %309 = vmatpush1.msra.mxu0 %v65
    %310 = vmatprep.subr.mxu0 %v70
    %311 = vmatpush1.msra.mxu0 %v69
    %312 = vmatprep.subr.mxu0 %v74
    %313 = vmatpush1.msra.mxu0 %v73
    %314 = vmatprep.subr.mxu0 %v78
    %315 = vmatpush1.msra.mxu0 %v77
    %316 = vmatprep.subr.mxu0 %v82
    %317 = vmatpush1.msra.mxu0 %v81
    %318 = vmatprep.subr.mxu0 %v86
    %319 = vmatpush1.msra.mxu0 %v85
    %320 = vmatprep.subr.mxu0 %v90
    %321 = vmatpush1.msra.mxu0 %v89
    %322 = vmatprep.subr.mxu0 %v94
    %323 = vmatpush1.msra.mxu0 %v93
    %324 = vmatprep.subr.mxu0 %v98
    %325 = vmatpush1.msra.mxu0 %v97
    %326 = vmatprep.subr.mxu0 %v102
    %327 = vmatpush1.msra.mxu0 %v101
    %328 = vmatprep.subr.mxu0 %v106
    %329 = vmatpush1.msra.mxu0 %v105
    %330 = vmatprep.subr.mxu0 %v110
    %331 = vmatpush1.msra.mxu0 %v109
    %332 = vmatprep.subr.mxu0 %v114
    %333 = vmatpush1.msra.mxu0 %v113
    %334 = vmatprep.subr.mxu0 %v118
    %335 = vmatpush1.msra.mxu0 %v117
    %336 = vmatprep.subr.mxu0 %v122
    %337 = vmatpush1.msra.mxu0 %v121
    %338 = vmatprep.subr.mxu0 0.0
    %339 = vmatpush1.msra.mxu0 0.0
    %340 = vmatprep.subr.mxu0 0.0
    %341 = vmatpush1.msra.mxu0 0.0
    %342 = vmatprep.subr.mxu0 0.0
    %343 = vmatpush1.msra.mxu0 0.0
    %344 = vmatprep.subr.mxu0 0.0
    %345 = vmatpush1.msra.mxu0 0.0
    %346 = vmatprep.subr.mxu0 0.0
    %347 = vmatpush1.msra.mxu0 0.0
    %348 = vmatprep.subr.mxu0 0.0
    %349 = vmatpush1.msra.mxu0 0.0
    %350 = vmatprep.subr.mxu0 0.0
    %351 = vmatpush1.msra.mxu0 0.0
    %352 = vmatprep.subr.mxu0 0.0
    %353 = vmatpush1.msra.mxu0 0.0
    %354 = vmatprep.subr.mxu0 0.0
    %355 = vmatpush1.msra.mxu0 0.0
    %356 = vmatprep.subr.mxu0 0.0
    %357 = vmatpush1.msra.mxu0 0.0
    %358 = vmatprep.subr.mxu0 0.0
    %359 = vmatpush1.msra.mxu0 0.0
    %360 = vmatprep.subr.mxu0 0.0
    %361 = vmatpush1.msra.mxu0 0.0
    %362 = vmatprep.subr.mxu0 0.0
    %363 = vmatpush1.msra.mxu0 0.0
    %364 = vmatprep.subr.mxu0 0.0
    %365 = vmatpush1.msra.mxu0 0.0
    %366 = vmatprep.subr.mxu0 0.0
    %367 = vmatpush1.msra.mxu0 0.0
    %368 = vmatprep.subr.mxu0 0.0
    %369 = vmatpush1.msra.mxu0 0.0
    %370 = vmatprep.mubr.f32.mxu0 0.0
    %371 = vmatmul.mubr.f32.gmra.mrb[0].mxu0 %v43
    %v372 = vpop.f32.mrb[0].mxu0
    %v373 = vadd.f32 %v136, %v372
    %v374 = vpop.f32.mrb[0].mxu0
    %v375 = vadd.f32 %v140, %v374
    %376 = vmatprep.mubr.f32.mxu0 0.0
    %377 = vmatmul.mubr.f32.gmra.mrb[0].mxu0 %v44
    %v378 = vpop.f32.mrb[0].mxu0
    %v379 = vadd.f32 %v136, %v378
    %v380 = vpop.f32.mrb[0].mxu0
    %v381 = vadd.f32 %v140, %v380
    %382 = vmatprep.mubr.f32.mxu0 0.0
    %383 = vmatmul.mubr.f32.gmra.mrb[0].mxu0 %v45
    %v384 = vpop.f32.mrb[0].mxu0
    %v385 = vadd.f32 %v136, %v384
    %v386 = vpop.f32.mrb[0].mxu0
    %v387 = vadd.f32 %v140, %v386
    %388 = vmatprep.mubr.f32.mxu0 0.0
    %389 = vmatmul.mubr.f32.gmra.mrb[0].mxu0 %v46
    %v390 = vpop.f32.mrb[0].mxu0
    %v391 = vadd.f32 %v136, %v390
    %v392 = vpop.f32.mrb[0].mxu0
    %v393 = vadd.f32 %v140, %v392
    %394 = vmatprep.mubr.f32.mxu0 0.0
    %395 = vmatmul.mubr.f32.gmra.mrb[0].mxu0 %v47
    %v396 = vpop.f32.mrb[0].mxu0
    %v397 = vadd.f32 %v136, %v396
    %v398 = vpop.f32.mrb[0].mxu0
    %v399 = vadd.f32 %v140, %v398
    %400 = vmatprep.mubr.f32.mxu0 0.0
    %401 = vmatmul.mubr.f32.gmra.mrb[0].mxu0 %v48
    %v402 = vpop.f32.mrb[0].mxu0
    %v403 = vadd.f32 %v136, %v402
    %v404 = vpop.f32.mrb[0].mxu0
    %v405 = vadd.f32 %v140, %v404
    %406 = vmatprep.mubr.f32.mxu0 0.0
    %407 = vmatmul.mubr.f32.gmra.mrb[0].mxu0 %v49
    %v408 = vpop.f32.mrb[0].mxu0
    %v409 = vadd.f32 %v136, %v408
    %v410 = vpop.f32.mrb[0].mxu0
    %v411 = vadd.f32 %v140, %v410
    %412 = vmatprep.mubr.f32.mxu0 0.0
    %413 = vmatmul.mubr.f32.gmra.mrb[0].mxu0 %v50
    %v414 = vpop.f32.mrb[0].mxu0
    %v415 = vadd.f32 %v136, %v414
    %v416 = vpop.f32.mrb[0].mxu0
    %v417 = vadd.f32 %v140, %v416
    %418 = vmatprep.mubr.f32.mxu0 0.0
    %419 = vmatmul.mubr.f32.gmra.mrb[0].mxu0 %v51
    %v420 = vpop.f32.mrb[0].mxu0
    %v421 = vadd.f32 %v136, %v420
    %v422 = vpop.f32.mrb[0].mxu0
    %v423 = vadd.f32 %v140, %v422
    %424 = vmatprep.mubr.f32.mxu0 0.0
    %425 = vmatmul.mubr.f32.gmra.mrb[0].mxu0 %v52
    %v426 = vpop.f32.mrb[0].mxu0
    %v427 = vadd.f32 %v136, %v426
    %v428 = vpop.f32.mrb[0].mxu0
    %v429 = vadd.f32 %v140, %v428
    %430 = vmatprep.mubr.f32.mxu0 0.0
    %431 = vmatmul.mubr.f32.gmra.mrb[0].mxu0 %v53
    %v432 = vpop.f32.mrb[0].mxu0
    %v433 = vadd.f32 %v136, %v432
    %v434 = vpop.f32.mrb[0].mxu0
    %v435 = vadd.f32 %v140, %v434
    %436 = vmatprep.mubr.f32.mxu0 0.0
    %437 = vmatmul.mubr.f32.gmra.mrb[0].mxu0 %v54
    %v438 = vpop.f32.mrb[0].mxu0
    %v439 = vadd.f32 %v136, %v438
    %v440 = vpop.f32.mrb[0].mxu0
    %v441 = vadd.f32 %v140, %v440
    %442 = vmatprep.mubr.f32.mxu0 0.0
    %443 = vmatmul.mubr.f32.gmra.mrb[0].mxu0 %v55
    %v444 = vpop.f32.mrb[0].mxu0
    %v445 = vadd.f32 %v136, %v444
    %v446 = vpop.f32.mrb[0].mxu0
    %v447 = vadd.f32 %v140, %v446
    %448 = vmatprep.mubr.f32.mxu0 0.0
    %449 = vmatmul.mubr.f32.gmra.mrb[0].mxu0 %v56
    %v450 = vpop.f32.mrb[0].mxu0
    %v451 = vadd.f32 %v136, %v450
    %v452 = vpop.f32.mrb[0].mxu0
    %v453 = vadd.f32 %v140, %v452
    %454 = vmatprep.mubr.f32.mxu0 0.0
    %455 = vmatmul.mubr.f32.gmra.mrb[0].mxu0 %v57
    %v456 = vpop.f32.mrb[0].mxu0
    %v457 = vadd.f32 %v136, %v456
    %v458 = vpop.f32.mrb[0].mxu0
    %v459 = vadd.f32 %v140, %v458
    %460 = vmatprep.mubr.f32.mxu0 0.0
    %461 = vmatmul.mubr.f32.gmra.mrb[0].mxu0 %v58
    %v462 = vpop.f32.mrb[0].mxu0
    %v463 = vadd.f32 %v136, %v462
    %v464 = vpop.f32.mrb[0].mxu0
    %v465 = vadd.f32 %v140, %v464
    %466 = vdwg.mxu0
    %467 = vst [vmem:[#allocation7] sm:$0xff] %v212
    %468 = vst [vmem:[#allocation7 + $0x8] sm:$0xff] %v214
    %469 = vst [vmem:[#allocation7 + $0x10] sm:$0xff] %v373
    %470 = vst [vmem:[#allocation7 + $0x18] sm:$0xff] %v375
    %471 = vst [vmem:[#allocation7 + $0x20] sm:$0xff] %v218
    %472 = vst [vmem:[#allocation7 + $0x28] sm:$0xff] %v220
    %473 = vst [vmem:[#allocation7 + $0x30] sm:$0xff] %v379
    %474 = vst [vmem:[#allocation7 + $0x38] sm:$0xff] %v381
    %475 = vst [vmem:[#allocation7 + $0x40] sm:$0xff] %v224
    %476 = vst [vmem:[#allocation7 + $0x48] sm:$0xff] %v226
    %477 = vst [vmem:[#allocation7 + $0x50] sm:$0xff] %v385
    %478 = vst [vmem:[#allocation7 + $0x58] sm:$0xff] %v387
    %479 = vst [vmem:[#allocation7 + $0x60] sm:$0xff] %v230
    %480 = vst [vmem:[#allocation7 + $0x68] sm:$0xff] %v232
    %481 = vst [vmem:[#allocation7 + $0x70] sm:$0xff] %v391
    %482 = vst [vmem:[#allocation7 + $0x78] sm:$0xff] %v393
    %483 = vst [vmem:[#allocation7 + $0x80] sm:$0xff] %v236
    %484 = vst [vmem:[#allocation7 + $0x88] sm:$0xff] %v238
    %485 = vst [vmem:[#allocation7 + $0x90] sm:$0xff] %v397
    %486 = vst [vmem:[#allocation7 + $0x98] sm:$0xff] %v399
    %487 = vst [vmem:[#allocation7 + $0xa0] sm:$0xff] %v242
    %488 = vst [vmem:[#allocation7 + $0xa8] sm:$0xff] %v244
    %489 = vst [vmem:[#allocation7 + $0xb0] sm:$0xff] %v403
    %490 = vst [vmem:[#allocation7 + $0xb8] sm:$0xff] %v405
    %491 = vst [vmem:[#allocation7 + $0xc0] sm:$0xff] %v248
    %492 = vst [vmem:[#allocation7 + $0xc8] sm:$0xff] %v250
    %493 = vst [vmem:[#allocation7 + $0xd0] sm:$0xff] %v409
    %494 = vst [vmem:[#allocation7 + $0xd8] sm:$0xff] %v411
    %495 = vst [vmem:[#allocation7 + $0xe0] sm:$0xff] %v254
    %496 = vst [vmem:[#allocation7 + $0xe8] sm:$0xff] %v256
    %497 = vst [vmem:[#allocation7 + $0xf0] sm:$0xff] %v415
    %498 = vst [vmem:[#allocation7 + $0xf8] sm:$0xff] %v417
    %499 = vst [vmem:[#allocation7 + $0x100] sm:$0xff] %v260
    %500 = vst [vmem:[#allocation7 + $0x108] sm:$0xff] %v262
    %501 = vst [vmem:[#allocation7 + $0x110] sm:$0xff] %v421
    %502 = vst [vmem:[#allocation7 + $0x118] sm:$0xff] %v423
    %503 = vst [vmem:[#allocation7 + $0x120] sm:$0xff] %v266
    %504 = vst [vmem:[#allocation7 + $0x128] sm:$0xff] %v268
    %505 = vst [vmem:[#allocation7 + $0x130] sm:$0xff] %v427
    %506 = vst [vmem:[#allocation7 + $0x138] sm:$0xff] %v429
    %507 = vst [vmem:[#allocation7 + $0x140] sm:$0xff] %v272
    %508 = vst [vmem:[#allocation7 + $0x148] sm:$0xff] %v274
    %509 = vst [vmem:[#allocation7 + $0x150] sm:$0xff] %v433
    %510 = vst [vmem:[#allocation7 + $0x158] sm:$0xff] %v435
    %511 = vst [vmem:[#allocation7 + $0x160] sm:$0xff] %v278
    %512 = vst [vmem:[#allocation7 + $0x168] sm:$0xff] %v280
    %513 = vst [vmem:[#allocation7 + $0x170] sm:$0xff] %v439
    %514 = vst [vmem:[#allocation7 + $0x178] sm:$0xff] %v441
    %515 = vst [vmem:[#allocation7 + $0x180] sm:$0xff] %v284
    %516 = vst [vmem:[#allocation7 + $0x188] sm:$0xff] %v286
    %517 = vst [vmem:[#allocation7 + $0x190] sm:$0xff] %v445
    %518 = vst [vmem:[#allocation7 + $0x198] sm:$0xff] %v447
    %519 = vst [vmem:[#allocation7 + $0x1a0] sm:$0xff] %v290
    %520 = vst [vmem:[#allocation7 + $0x1a8] sm:$0xff] %v292
    %521 = vst [vmem:[#allocation7 + $0x1b0] sm:$0xff] %v451
    %522 = vst [vmem:[#allocation7 + $0x1b8] sm:$0xff] %v453
    %523 = vst [vmem:[#allocation7 + $0x1c0] sm:$0xff] %v296
    %524 = vst [vmem:[#allocation7 + $0x1c8] sm:$0xff] %v298
    %525 = vst [vmem:[#allocation7 + $0x1d0] sm:$0xff] %v457
    %526 = vst [vmem:[#allocation7 + $0x1d8] sm:$0xff] %v459
    %527 = vst [vmem:[#allocation7 + $0x1e0] sm:$0xff] %v302
    %528 = vst [vmem:[#allocation7 + $0x1e8] sm:$0xff] %v304
    %529 = vst [vmem:[#allocation7 + $0x1f0] sm:$0xff] %v463
    %530 = vst [vmem:[#allocation7 + $0x1f8] sm:$0xff] %v465
    // Predicated region
    $region22: #{tpu_custom_call.1} parent=1 // pred_check
      _
    $region23: #{tpu_custom_call.1} parent=1 // pred_check_branch
      %532 = sbr.rel (0) target = $region25
    $region24: #{tpu_custom_call.1} parent=1 // pred_region
      %s534 = ssub.s32 8192, 8192
      %535 = vsyncadd [#allocation4], %s534
      %s536 = sshll.u32 [#allocation7], 4
      %s537 = int_to_ptr.vmem [resolvable:$true] %s536
      %542 = dma.vmem_to_hbm [thread:$0]  %s537, 8192, %s3, [#allocation4], 512, 512, 32
    $region25: #{tpu_custom_call.1} parent=1 // pred_fallthru
      _
    // Predicated region
    $region26: #{tpu_custom_call.1} parent=1 // pred_check
      _
    $region27: #{tpu_custom_call.1} parent=1 // pred_check_branch
      %544 = sbr.rel (0) target = $region29
    $region28: #{tpu_custom_call.1} parent=1 // pred_region
      %545 = dma.done [#allocation4], 8192
    $region29: #{tpu_custom_call.1} parent=1 // pred_fallthru
      _
    %546 = vsyncpa [#allocation3], 1
    %547 = vsyncpa [#allocation6], 1
    %548 = vsyncpa [#allocation4], 1

</llo_original>
